<compile_context>
chip_gen: v5e
topology: v5e:2x2
jax: 0.10.0
libtpu: 0.0.40
codegen_flags: <defaults>
</compile_context>

<pallas_src>
import jax
import jax.numpy as jnp
from jax import lax
from jax.experimental import pallas as pl
from jax.experimental.pallas import tpu as pltpu


def _round_up(x, m):
    return (x + m - 1) // m * m


def _chip_profile():
    """(vmem_limit_bytes, target_block_bytes, n_tensorcores) for this chip."""
    kind = ""
    try:
        kind = jax.devices()[0].device_kind.lower()
    except Exception:
        pass
    try:
        vmem_phys = int(pltpu.get_tpu_info().vmem_capacity_bytes)
    except Exception:
        vmem_phys = (64 << 20) if "v7" in kind else (128 << 20)
    if "v7" in kind:
        # 64 MiB physical VMEM; 2 TensorCores share the ("parallel",) grid.
        return min(48 << 20, vmem_phys * 3 // 4), 6 << 20, 2
    # v4/v5p megacore also shards "parallel" grid axes across 2 cores.
    n_cores = 2 if ("v4" in kind or "v5p" in kind) else 1
    # v5e / v6e: 128 MiB physical VMEM, grid is a serial loop on one core.
    return min(96 << 20, vmem_phys * 3 // 4), 12 << 20, n_cores


def _pick_batch_block(n, per_elem_hbm, per_elem_vmem, *, target_block_bytes,
                      vmem_budget_bytes, n_cores):
    """Largest Nb dividing N that fits the HBM-block target and the VMEM
    budget (including scratch/f32 intermediates).  On multi-TensorCore parts
    prefer step counts that are a multiple of the core count."""
    divisors = [d for d in range(1, n + 1) if n % d == 0]
    cands = [nb for nb in divisors
             if nb * per_elem_hbm <= target_block_bytes
             and nb * per_elem_vmem <= vmem_budget_bytes]
    if not cands:
        return 1
    if n_cores > 1 and n % n_cores == 0:
        pref = [nb for nb in cands if (n // nb) % n_cores == 0]
        if pref:
            return max(pref)
    return max(cands)


def _make_conv_leaky_kernel(cin, cout, ksz, w_img, halo, m_len):
    """conv 'same' + LeakyReLU(0.1) on one batch shard (im2col + 1 matmul)."""
    pad = (ksz - 1) // 2
    kk = ksz * ksz
    # Static per-tap lane offsets into the halo-padded input block.
    starts = [halo + (kh - pad) * w_img + (kw - pad)
              for kh in range(ksz) for kw in range(ksz)]

    def kernel(w_ref, m_ref, x_ref, o_ref, col_ref):
        # w_ref  : [Cout, K]      bf16  tap-major weights + bias column (replicated)
        # m_ref  : [KH*KW, M]     bf16  per-tap validity masks          (replicated)
        # x_ref  : [1, Cin, Wb]   bf16  halo-padded shard of nb flattened images
        # o_ref  : [1, Cout, M]         lane-dense flattened output (M % 128 == 0)
        # col_ref: [K, M]         bf16  in-VMEM im2col scratch
        #
        # 1) im2col: one masked, statically shifted copy per tap (bf16 masking
        #    on Cin rows, not f32 partials; on v5e a select would avoid bf16
        #    converts, but v5e is DMA-bound here so the multiply is hidden).
        for t, s in enumerate(starts):
            col_ref[t * cin:(t + 1) * cin, :] = (
                x_ref[0, :, s:s + m_len] * m_ref[t:t + 1, :])
        # Ones row: multiplies the bias column of w_ref inside the matmul.
        col_ref[kk * cin:kk * cin + 1, :] = jnp.ones((1, m_len), jnp.bfloat16)
        # 2) single MXU matmul with f32 accumulation: [Cout,K] x [K, Nb*Lpad].
        y = jnp.dot(w_ref[...], col_ref[...], preferred_element_type=jnp.float32)
        # 3) LeakyReLU(0.1) and lane-dense store.
        y = jnp.maximum(y, 0.1 * y)
        o_ref[0, :, :] = y.astype(o_ref.dtype)

    return kernel


def data_parallel_forward(x, weight, bias, *, out_dtype=jnp.bfloat16):
    """DataParallel(conv3x3 'same' + LeakyReLU(0.1)).forward(x).

    x:      [N, Cin, H, W]        (NCHW, any float dtype)
    weight: [Cout, Cin, KH, KW]   (square, odd kernel)
    bias:   [Cout]
    returns [N, Cout, H, W] in `out_dtype`.

    Note: activations/weights/bias are computed in bf16 with f32 MXU
    accumulation, and the result is stored in `out_dtype` (default bf16) to
    halve HBM writeback; pass out_dtype=jnp.float32 if wider output is needed.
    """
    n, cin, h, w = x.shape
    cout, cin_w, ksz, ksz2 = weight.shape
    assert cin_w == cin and ksz == ksz2 and ksz % 2 == 1, \
        "representative block is an odd square 'same' conv"
    pad = (ksz - 1) // 2

    l_out = h * w
    l_pad = _round_up(max(l_out, 128), 128)      # lane-dense per-image length
    halo = pad * w + pad                         # max |tap shift| in flat index
    out_sz = jnp.dtype(out_dtype).itemsize
    k_dim = ksz * ksz * cin + 1                  # taps + bias row

    vmem_limit, target_block, n_cores = _chip_profile()

    per_elem_hbm = cin * l_pad * 2 + cout * l_pad * out_sz
    per_elem_vmem = (2 * cin * l_pad * 2            # x block  (double buffered)
                     + 2 * cout * l_pad * out_sz    # out block (double buffered)
                     + k_dim * l_pad * 2            # im2col scratch
                     + 2 * cout * l_pad * 4)        # f32 matmul result + leaky temp
    nb = _pick_batch_block(n, per_elem_hbm, per_elem_vmem,
                           target_block_bytes=target_block,
                           vmem_budget_bytes=int(vmem_limit * 0.75),
                           n_cores=n_cores)
    g = n // nb
    m_len = nb * l_pad
    w_blk = _round_up(m_len + 2 * halo, 128)

    # ---- scatter(x, dim=0): one grid step == one "device" shard of nb images.
    # Layout per shard: [halo zeros][img0 .. img_{nb-1}, each Lpad long][tail].
    xq = x.astype(jnp.bfloat16).reshape(n, cin, l_out)
    xq = jnp.pad(xq, ((0, 0), (0, 0), (0, l_pad - l_out)))
    xq = xq.reshape(g, nb, cin, l_pad).transpose(0, 2, 1, 3).reshape(g, cin, m_len)
    xq = jnp.pad(xq, ((0, 0), (0, 0), (halo, w_blk - halo - m_len)))

    # ---- replicate(module): tap-major weight matrix, bias folded as column K-1.
    wm = jnp.transpose(weight, (0, 2, 3, 1)).reshape(cout, ksz * ksz * cin)
    wm = jnp.concatenate([wm, bias.reshape(cout, 1)], axis=1).astype(jnp.bfloat16)

    # Per-tap validity mask over one image's padded flat spatial axis, tiled
    # over the nb images of a shard.  Zeros kill row/column wrap-around,
    # cross-image bleed and the lane-padding columns.
    lpos = jnp.arange(l_pad)
    r, c = lpos // w, lpos % w
    rows = []
    for kh in range(ksz):
        for kw in range(ksz):
            ok = ((lpos < l_out)
                  & (r + kh - pad >= 0) & (r + kh - pad < h)
                  & (c + kw - pad >= 0) & (c + kw - pad < w))
            rows.append(ok)
    mask = jnp.stack(rows, axis=0).astype(jnp.bfloat16)     # [KH*KW, Lpad]
    mask = jnp.tile(mask, (1, nb))                           # [KH*KW, Nb*Lpad]

    kernel = _make_conv_leaky_kernel(cin, cout, ksz, w, halo, m_len)

    cost = pl.CostEstimate(
        flops=2 * n * cout * cin * ksz * ksz * l_out,
        transcendentals=0,
        bytes_accessed=int(xq.size * 2 + wm.size * 2 + mask.size * 2
                           + g * cout * m_len * out_sz))

    out_blk = pl.pallas_call(
        kernel,
        out_shape=jax.ShapeDtypeStruct((g, cout, m_len), out_dtype),
        grid=(g,),
        in_specs=[
            pl.BlockSpec((cout, k_dim), lambda i: (0, 0)),        # replicate(weights+bias)
            pl.BlockSpec((ksz * ksz, m_len), lambda i: (0, 0)),   # replicate(masks)
            pl.BlockSpec((1, cin, w_blk), lambda i: (i, 0, 0)),   # scatter(x, dim=0)
        ],
        out_specs=pl.BlockSpec((1, cout, m_len), lambda i: (i, 0, 0)),  # gather(dim=0)
        scratch_shapes=[pltpu.VMEM((k_dim, m_len), jnp.bfloat16)],
        compiler_params=pltpu.CompilerParams(
            dimension_semantics=("parallel",),
            vmem_limit_bytes=vmem_limit),
        cost_estimate=cost,
    )(wm, mask, xq)

    # ---- gather(outputs, dim=0): per-shard blocks back to [N, Cout, H, W].
    out = out_blk.reshape(g, cout, nb, l_pad).transpose(0, 2, 1, 3)
    out = out.reshape(n, cout, l_pad)[:, :, :l_out].reshape(n, cout, h, w)
    return out


if __name__ == "__main__":
    key = jax.random.PRNGKey(0)
    kx, kwt, kb = jax.random.split(key, 3)
    N, Cin, H, W, Cout = 2, 4, 16, 16, 8

    x = jax.random.normal(kx, (N, Cin, H, W), dtype=jnp.float32)
    weight = jax.random.normal(kwt, (Cout, Cin, 3, 3), dtype=jnp.float32) * 0.1
    bias = jax.random.normal(kb, (Cout,), dtype=jnp.float32) * 0.1

    out = jax.jit(data_parallel_forward)(x, weight, bias)
    out = jax.block_until_ready(out)

    # Reference with the same bf16 quantization of activations/weights/bias
    # (isolates kernel correctness from the intentional bf16 I/O).
    xb = x.astype(jnp.bfloat16).astype(jnp.float32)
    wb = weight.astype(jnp.bfloat16).astype(jnp.float32)
    bb = bias.astype(jnp.bfloat16).astype(jnp.float32)
    ref = lax.conv_general_dilated(
        xb, wb, window_strides=(1, 1), padding=((1, 1), (1, 1)),
        dimension_numbers=("NCHW", "OIHW", "NCHW"))
    ref = ref + bb.reshape(1, Cout, 1, 1)
    ref = jnp.maximum(ref, 0.1 * ref)

    assert out.shape == (N, Cout, H, W)
    err = float(jnp.max(jnp.abs(out.astype(jnp.float32) - ref)))
    assert err < 5e-2, f"max abs error {err}"

    print("KERNEL_OK")
</pallas_src>

<mosaic_0001>
module attributes {stable_mosaic.version = 11 : i64} {
  func.func @kernel(%arg0: i32, %arg1: memref<8x37xbf16, #tpu.memory_space<vmem>>, %arg2: memref<9x512xbf16, #tpu.memory_space<vmem>>, %arg3: memref<1x4x640xbf16, #tpu.memory_space<vmem>>, %arg4: memref<1x8x512xbf16, #tpu.memory_space<vmem>>, %arg5: memref<37x512xbf16, #tpu.memory_space<vmem>>) attributes {dimension_semantics = [#tpu.dimension_semantics<parallel>], iteration_bounds = array<i64: 1>, scalar_prefetch = 0 : i64, scratch_operands = 1 : i64, tpu.core_type = #tpu.core_type<tc>, window_params = [{pipeline_mode = #tpu.pipeline_mode<synchronous>, transform_indices = @transform_0, window_bounds = array<i64: 8, 37>}, {pipeline_mode = #tpu.pipeline_mode<synchronous>, transform_indices = @transform_1, window_bounds = array<i64: 9, 512>}, {transform_indices = @transform_2, window_bounds = array<i64: 1, 4, 640>}, {transform_indices = @transform_3, window_bounds = array<i64: 1, 8, 512>}]} {
    %c0 = arith.constant 0 : index
    %c0_0 = arith.constant 0 : index
    %c0_1 = arith.constant 0 : index
    %0 = vector.load %arg3[%c0, %c0_0, %c0_1] : memref<1x4x640xbf16, #tpu.memory_space<vmem>>, vector<1x4x512xbf16>
    %1 = vector.shape_cast %0 : vector<1x4x512xbf16> to vector<4x512xbf16>
    %c0_2 = arith.constant 0 : index
    %c0_3 = arith.constant 0 : index
    %2 = vector.load %arg2[%c0_2, %c0_3] : memref<9x512xbf16, #tpu.memory_space<vmem>>, vector<1x512xbf16>
    %3 = vector.broadcast %2 : vector<1x512xbf16> to vector<4x512xbf16>
    %4 = arith.mulf %1, %3 : vector<4x512xbf16>
    %c0_4 = arith.constant 0 : index
    %c0_5 = arith.constant 0 : index
    %5 = vector.load %arg5[%c0_4, %c0_5] : memref<37x512xbf16, #tpu.memory_space<vmem>>, vector<4x512xbf16>
    tpu.vector_store %arg5[%c0_4, %c0_5], %4 {strides = array<i32>} : memref<37x512xbf16, #tpu.memory_space<vmem>>, vector<4x512xbf16>,
    %c0_6 = arith.constant 0 : index
    %c0_7 = arith.constant 0 : index
    %c1 = arith.constant 1 : index
    %6 = vector.load %arg3[%c0_6, %c0_7, %c1] : memref<1x4x640xbf16, #tpu.memory_space<vmem>>, vector<1x4x512xbf16>
    %7 = vector.shape_cast %6 : vector<1x4x512xbf16> to vector<4x512xbf16>
    %c1_8 = arith.constant 1 : index
    %c0_9 = arith.constant 0 : index
    %8 = vector.load %arg2[%c1_8, %c0_9] : memref<9x512xbf16, #tpu.memory_space<vmem>>, vector<1x512xbf16>
    %9 = vector.broadcast %8 : vector<1x512xbf16> to vector<4x512xbf16>
    %10 = arith.mulf %7, %9 : vector<4x512xbf16>
    %c4 = arith.constant 4 : index
    %c0_10 = arith.constant 0 : index
    %11 = vector.load %arg5[%c4, %c0_10] : memref<37x512xbf16, #tpu.memory_space<vmem>>, vector<4x512xbf16>
    tpu.vector_store %arg5[%c4, %c0_10], %10 {strides = array<i32>} : memref<37x512xbf16, #tpu.memory_space<vmem>>, vector<4x512xbf16>,
    %c0_11 = arith.constant 0 : index
    %c0_12 = arith.constant 0 : index
    %c2 = arith.constant 2 : index
    %12 = vector.load %arg3[%c0_11, %c0_12, %c2] : memref<1x4x640xbf16, #tpu.memory_space<vmem>>, vector<1x4x512xbf16>
    %13 = vector.shape_cast %12 : vector<1x4x512xbf16> to vector<4x512xbf16>
    %c2_13 = arith.constant 2 : index
    %c0_14 = arith.constant 0 : index
    %14 = vector.load %arg2[%c2_13, %c0_14] : memref<9x512xbf16, #tpu.memory_space<vmem>>, vector<1x512xbf16>
    %15 = vector.broadcast %14 : vector<1x512xbf16> to vector<4x512xbf16>
    %16 = arith.mulf %13, %15 : vector<4x512xbf16>
    %c8 = arith.constant 8 : index
    %c0_15 = arith.constant 0 : index
    %17 = vector.load %arg5[%c8, %c0_15] : memref<37x512xbf16, #tpu.memory_space<vmem>>, vector<4x512xbf16>
    tpu.vector_store %arg5[%c8, %c0_15], %16 {strides = array<i32>} : memref<37x512xbf16, #tpu.memory_space<vmem>>, vector<4x512xbf16>,
    %c0_16 = arith.constant 0 : index
    %c0_17 = arith.constant 0 : index
    %c16 = arith.constant 16 : index
    %18 = vector.load %arg3[%c0_16, %c0_17, %c16] : memref<1x4x640xbf16, #tpu.memory_space<vmem>>, vector<1x4x512xbf16>
    %19 = vector.shape_cast %18 : vector<1x4x512xbf16> to vector<4x512xbf16>
    %c3 = arith.constant 3 : index
    %c0_18 = arith.constant 0 : index
    %20 = vector.load %arg2[%c3, %c0_18] : memref<9x512xbf16, #tpu.memory_space<vmem>>, vector<1x512xbf16>
    %21 = vector.broadcast %20 : vector<1x512xbf16> to vector<4x512xbf16>
    %22 = arith.mulf %19, %21 : vector<4x512xbf16>
    %c12 = arith.constant 12 : index
    %c0_19 = arith.constant 0 : index
    %23 = vector.load %arg5[%c12, %c0_19] : memref<37x512xbf16, #tpu.memory_space<vmem>>, vector<4x512xbf16>
    tpu.vector_store %arg5[%c12, %c0_19], %22 {strides = array<i32>} : memref<37x512xbf16, #tpu.memory_space<vmem>>, vector<4x512xbf16>,
    %c0_20 = arith.constant 0 : index
    %c0_21 = arith.constant 0 : index
    %c17 = arith.constant 17 : index
    %24 = vector.load %arg3[%c0_20, %c0_21, %c17] : memref<1x4x640xbf16, #tpu.memory_space<vmem>>, vector<1x4x512xbf16>
    %25 = vector.shape_cast %24 : vector<1x4x512xbf16> to vector<4x512xbf16>
    %c4_22 = arith.constant 4 : index
    %c0_23 = arith.constant 0 : index
    %26 = vector.load %arg2[%c4_22, %c0_23] : memref<9x512xbf16, #tpu.memory_space<vmem>>, vector<1x512xbf16>
    %27 = vector.broadcast %26 : vector<1x512xbf16> to vector<4x512xbf16>
    %28 = arith.mulf %25, %27 : vector<4x512xbf16>
    %c16_24 = arith.constant 16 : index
    %c0_25 = arith.constant 0 : index
    %29 = vector.load %arg5[%c16_24, %c0_25] : memref<37x512xbf16, #tpu.memory_space<vmem>>, vector<4x512xbf16>
    tpu.vector_store %arg5[%c16_24, %c0_25], %28 {strides = array<i32>} : memref<37x512xbf16, #tpu.memory_space<vmem>>, vector<4x512xbf16>,
    %c0_26 = arith.constant 0 : index
    %c0_27 = arith.constant 0 : index
    %c18 = arith.constant 18 : index
    %30 = vector.load %arg3[%c0_26, %c0_27, %c18] : memref<1x4x640xbf16, #tpu.memory_space<vmem>>, vector<1x4x512xbf16>
    %31 = vector.shape_cast %30 : vector<1x4x512xbf16> to vector<4x512xbf16>
    %c5 = arith.constant 5 : index
    %c0_28 = arith.constant 0 : index
    %32 = vector.load %arg2[%c5, %c0_28] : memref<9x512xbf16, #tpu.memory_space<vmem>>, vector<1x512xbf16>
    %33 = vector.broadcast %32 : vector<1x512xbf16> to vector<4x512xbf16>
    %34 = arith.mulf %31, %33 : vector<4x512xbf16>
    %c20 = arith.constant 20 : index
    %c0_29 = arith.constant 0 : index
    %35 = vector.load %arg5[%c20, %c0_29] : memref<37x512xbf16, #tpu.memory_space<vmem>>, vector<4x512xbf16>
    tpu.vector_store %arg5[%c20, %c0_29], %34 {strides = array<i32>} : memref<37x512xbf16, #tpu.memory_space<vmem>>, vector<4x512xbf16>,
    %c0_30 = arith.constant 0 : index
    %c0_31 = arith.constant 0 : index
    %c32 = arith.constant 32 : index
    %36 = vector.load %arg3[%c0_30, %c0_31, %c32] : memref<1x4x640xbf16, #tpu.memory_space<vmem>>, vector<1x4x512xbf16>
    %37 = vector.shape_cast %36 : vector<1x4x512xbf16> to vector<4x512xbf16>
    %c6 = arith.constant 6 : index
    %c0_32 = arith.constant 0 : index
    %38 = vector.load %arg2[%c6, %c0_32] : memref<9x512xbf16, #tpu.memory_space<vmem>>, vector<1x512xbf16>
    %39 = vector.broadcast %38 : vector<1x512xbf16> to vector<4x512xbf16>
    %40 = arith.mulf %37, %39 : vector<4x512xbf16>
    %c24 = arith.constant 24 : index
    %c0_33 = arith.constant 0 : index
    %41 = vector.load %arg5[%c24, %c0_33] : memref<37x512xbf16, #tpu.memory_space<vmem>>, vector<4x512xbf16>
    tpu.vector_store %arg5[%c24, %c0_33], %40 {strides = array<i32>} : memref<37x512xbf16, #tpu.memory_space<vmem>>, vector<4x512xbf16>,
    %c0_34 = arith.constant 0 : index
    %c0_35 = arith.constant 0 : index
    %c33 = arith.constant 33 : index
    %42 = vector.load %arg3[%c0_34, %c0_35, %c33] : memref<1x4x640xbf16, #tpu.memory_space<vmem>>, vector<1x4x512xbf16>
    %43 = vector.shape_cast %42 : vector<1x4x512xbf16> to vector<4x512xbf16>
    %c7 = arith.constant 7 : index
    %c0_36 = arith.constant 0 : index
    %44 = vector.load %arg2[%c7, %c0_36] : memref<9x512xbf16, #tpu.memory_space<vmem>>, vector<1x512xbf16>
    %45 = vector.broadcast %44 : vector<1x512xbf16> to vector<4x512xbf16>
    %46 = arith.mulf %43, %45 : vector<4x512xbf16>
    %c28 = arith.constant 28 : index
    %c0_37 = arith.constant 0 : index
    %47 = vector.load %arg5[%c28, %c0_37] : memref<37x512xbf16, #tpu.memory_space<vmem>>, vector<4x512xbf16>
    tpu.vector_store %arg5[%c28, %c0_37], %46 {strides = array<i32>} : memref<37x512xbf16, #tpu.memory_space<vmem>>, vector<4x512xbf16>,
    %c0_38 = arith.constant 0 : index
    %c0_39 = arith.constant 0 : index
    %c34 = arith.constant 34 : index
    %48 = vector.load %arg3[%c0_38, %c0_39, %c34] : memref<1x4x640xbf16, #tpu.memory_space<vmem>>, vector<1x4x512xbf16>
    %49 = vector.shape_cast %48 : vector<1x4x512xbf16> to vector<4x512xbf16>
    %c8_40 = arith.constant 8 : index
    %c0_41 = arith.constant 0 : index
    %50 = vector.load %arg2[%c8_40, %c0_41] : memref<9x512xbf16, #tpu.memory_space<vmem>>, vector<1x512xbf16>
    %51 = vector.broadcast %50 : vector<1x512xbf16> to vector<4x512xbf16>
    %52 = arith.mulf %49, %51 : vector<4x512xbf16>
    %c32_42 = arith.constant 32 : index
    %c0_43 = arith.constant 0 : index
    %53 = vector.load %arg5[%c32_42, %c0_43] : memref<37x512xbf16, #tpu.memory_space<vmem>>, vector<4x512xbf16>
    tpu.vector_store %arg5[%c32_42, %c0_43], %52 {strides = array<i32>} : memref<37x512xbf16, #tpu.memory_space<vmem>>, vector<4x512xbf16>,
    %cst = arith.constant 1.000000e+00 : bf16
    %54 = vector.broadcast %cst : bf16 to vector<1x512xbf16>
    %c36 = arith.constant 36 : index
    %c0_44 = arith.constant 0 : index
    %55 = vector.load %arg5[%c36, %c0_44] : memref<37x512xbf16, #tpu.memory_space<vmem>>, vector<1x512xbf16>
    tpu.vector_store %arg5[%c36, %c0_44], %54 {strides = array<i32>} : memref<37x512xbf16, #tpu.memory_space<vmem>>, vector<1x512xbf16>,
    %c0_45 = arith.constant 0 : index
    %c0_46 = arith.constant 0 : index
    %56 = vector.load %arg1[%c0_45, %c0_46] : memref<8x37xbf16, #tpu.memory_space<vmem>>, vector<8x37xbf16>
    %c0_47 = arith.constant 0 : index
    %c0_48 = arith.constant 0 : index
    %57 = vector.load %arg5[%c0_47, %c0_48] : memref<37x512xbf16, #tpu.memory_space<vmem>>, vector<37x512xbf16>
    %cst_49 = arith.constant dense<0.000000e+00> : vector<8x512xf32>
    %58 = tpu.matmul %56, %57, %cst_49 {dimension_numbers = #tpu.dot_dimension_numbers<[1], [0], [0], [1], [0, 0, 1, 1], [], []>} : vector<8x37xbf16>, vector<37x512xbf16>, vector<8x512xf32> -> vector<8x512xf32>
    %cst_50 = arith.constant 1.000000e-01 : f32
    %59 = vector.broadcast %cst_50 : f32 to vector<8x512xf32>
    %60 = arith.mulf %59, %58 : vector<8x512xf32>
    %61 = arith.maximumf %58, %60 : vector<8x512xf32>
    %62 = arith.truncf %61 : vector<8x512xf32> to vector<8x512xbf16>
    %c0_51 = arith.constant 0 : index
    %c0_52 = arith.constant 0 : index
    %c0_53 = arith.constant 0 : index
    %63 = vector.load %arg4[%c0_51, %c0_52, %c0_53] : memref<1x8x512xbf16, #tpu.memory_space<vmem>>, vector<1x8x512xbf16>
    %64 = vector.shape_cast %63 : vector<1x8x512xbf16> to vector<8x512xbf16>
    %65 = vector.shape_cast %62 : vector<8x512xbf16> to vector<1x8x512xbf16>
    tpu.vector_store %arg4[%c0_51, %c0_52, %c0_53], %65 {strides = array<i32>} : memref<1x8x512xbf16, #tpu.memory_space<vmem>>, vector<1x8x512xbf16>,
    return
  }
  func.func @transform_0(%arg0: i32) -> (i32, i32) {
    %c0_i32 = arith.constant 0 : i32
    %c0_i32_0 = arith.constant 0 : i32
    %c0_i32_1 = arith.constant 0 : i32
    return %c0_i32, %c0_i32_0 : i32, i32
  }
  func.func @transform_1(%arg0: i32) -> (i32, i32) {
    %c0_i32 = arith.constant 0 : i32
    %c0_i32_0 = arith.constant 0 : i32
    %c0_i32_1 = arith.constant 0 : i32
    return %c0_i32, %c0_i32_0 : i32, i32
  }
  func.func @transform_2(%arg0: i32) -> (i32, i32, i32) {
    %c0_i32 = arith.constant 0 : i32
    %c0_i32_0 = arith.constant 0 : i32
    %c0_i32_1 = arith.constant 0 : i32
    return %arg0, %c0_i32, %c0_i32_0 : i32, i32, i32
  }
  func.func @transform_3(%arg0: i32) -> (i32, i32, i32) {
    %c0_i32 = arith.constant 0 : i32
    %c0_i32_0 = arith.constant 0 : i32
    %c0_i32_1 = arith.constant 0 : i32
    return %arg0, %c0_i32, %c0_i32_0 : i32, i32, i32
  }
}

</mosaic_0001>

<llo_original>
// kernel: data_parallel_forward.1
$region0: #{data_parallel_forward.1}
  #allocation0 [shape = 'u32[]', space=smem, size = 0x4, offset = 0x4, fixed_abs, tag = 'smem constant byte address 0x4 - core index']
  #allocation1 [shape = 'u32[72,128]{1,0:T(1,128)}', space=vmem, size = 0x9000, scoped, tag = 'internal scratch']
  #allocation2 [shape = 'bf16[37,512]{1,0:T(8,128)(2,1)}', space=vmem, size = 0xa000, scoped, tag = 'scratch operand']
  %s0 = inlined_call_operand.vmem [shape: bf16[8,37], index: 0, kind: input, shape index: {}]
  %s1 = inlined_call_operand.vmem [shape: bf16[9,512], index: 1, kind: input, shape index: {}]
  %s2 = inlined_call_operand.vmem [shape: bf16[1,4,640], index: 2, kind: input, shape index: {}]
  %s3 = inlined_call_operand.vmem [shape: bf16[1,8,512], index: 3, kind: output, shape index: {}]
  %s4 = sld [smem:[#allocation0]]
  $region22: #{data_parallel_forward.1} parent=0
    _
  %s6 = ssub.s32 1, %s4
  %s7 = scalar_select 0, %s6, %s4
  // Predicated region
  $region2: #{data_parallel_forward.1} parent=0 // pred_check
    _
  $region3: #{data_parallel_forward.1} parent=0 // pred_check_branch
    %9 = sbr.rel (0) target = $region5
  $region4: #{data_parallel_forward.1} parent=0 // pred_region
    _
  $region5: #{data_parallel_forward.1} parent=0 // pred_fallthru
    _
  // Predicated region
  $region6: #{data_parallel_forward.1} parent=0 // pred_check
    _
  $region7: #{data_parallel_forward.1} parent=0 // pred_check_branch
    %11 = sbr.rel (0) target = $region9
  $region8: #{data_parallel_forward.1} parent=0 // pred_region
    _
  $region9: #{data_parallel_forward.1} parent=0 // pred_fallthru
    _
  // Predicated region
  $region10: #{data_parallel_forward.1} parent=0 // pred_check
    _
  $region11: #{data_parallel_forward.1} parent=0 // pred_check_branch
    %13 = sbr.rel (0) target = $region13
  $region12: #{data_parallel_forward.1} parent=0 // pred_region
    _
  $region13: #{data_parallel_forward.1} parent=0 // pred_fallthru
    _
  %v16 = vld [vmem:[%s2] sm:$0xff]
  %v17 = vld [vmem:[%s1] sm:$0x11]
  %v18 = vld [vmem:[%s1 + $0x8] sm:$0x11]
  %v21 = vunpack.c.l.b16 %v17
  %v22 = vunpack.c.h.b16 %v17
  %v23 = vunpack.c.l.b16 %v18
  %v24 = vunpack.c.h.b16 %v18
  %v25 = vpack.c.b16 %v21, %v21
  %v26 = vpack.c.b16 %v22, %v22
  %v27 = vpack.c.b16 %v23, %v23
  %v28 = vpack.c.b16 %v24, %v24
  %v30 = vpack.i.b16 %v25, %v25
  %v32 = vperm.slane %v30, 0
  %v34 = vpack.i.b16 %v26, %v26
  %v36 = vperm.slane %v34, 0
  %v38 = vpack.i.b16 %v27, %v27
  %v40 = vperm.slane %v38, 0
  %v42 = vpack.i.b16 %v28, %v28
  %v44 = vperm.slane %v42, 0
  %v45 = vunpack.c.l.bf16 %v16
  %v46 = vunpack.c.h.bf16 %v16
  %v47 = vunpack.c.l.bf16 %v32
  %v48 = vunpack.c.l.bf16 %v36
  %v49 = vunpack.c.l.bf16 %v40
  %v50 = vunpack.c.l.bf16 %v44
  %v55 = vrot.slane %v48, 4
  %v56 = vrot.slane %v50, 4
  %vm57 = vcmask 1043456
  %v58 = vsel %vm57, %v47, %v55
  %v59 = vsel %vm57, %v49, %v56
  %v62 = vmul.f32 %v45, %v58
  %v63 = vmul.f32 %v46, %v59
  %66 = vst [vmem:[#allocation1] ss:$2 sm:$0xff] %v62
  %s67 = scalar_lea.vmem [#allocation1], 16
  %68 = vst [vmem:[%s67] ss:$2 sm:$0xff] %v63
  %v69 = vld.sshfl [vmem:[#allocation1] sm:$0xff pattern:$0x75316420]
  %v70 = vld.sshfl [vmem:[#allocation1 + $0x8] sm:$0xff pattern:$0x75316420]
  %v71 = vld.sshfl [vmem:[#allocation1 + $0x10] sm:$0xff pattern:$0x75316420]
  %v72 = vld.sshfl [vmem:[#allocation1 + $0x18] sm:$0xff pattern:$0x75316420]
  %v77 = vpack.c.bf16 %v70, %v69
  %v78 = vpack.c.bf16 %v72, %v71
  %79 = vst [vmem:[#allocation2] sm:$0x33] %v77
  %80 = vst [vmem:[#allocation2 + $0x8] sm:$0x33] %v78
  %v81 = vld [vmem:[%s2] sm:$0xff]
  %v82 = vld [vmem:[%s2 + $0x8] sm:$0x3]
  %v83 = vld [vmem:[%s1] sm:$0x11]
  %v84 = vld [vmem:[%s1 + $0x8] sm:$0x11]
  %v87 = vunpack.c.l.b16 %v83
  %v88 = vunpack.c.h.b16 %v83
  %v89 = vunpack.c.l.b16 %v84
  %v90 = vunpack.c.h.b16 %v84
  %v91 = vpack.c.b16 %v87, %v87
  %v92 = vpack.c.b16 %v88, %v88
  %v93 = vpack.c.b16 %v89, %v89
  %v94 = vpack.c.b16 %v90, %v90
  %v96 = vshrl.u32 %v91, 16
  %v97 = vpack.i.b16 %v96, %v96
  %v99 = vperm.slane %v97, 0
  %v101 = vshrl.u32 %v92, 16
  %v102 = vpack.i.b16 %v101, %v101
  %v104 = vperm.slane %v102, 0
  %v106 = vshrl.u32 %v93, 16
  %v107 = vpack.i.b16 %v106, %v106
  %v109 = vperm.slane %v107, 0
  %v111 = vshrl.u32 %v94, 16
  %v112 = vpack.i.b16 %v111, %v111
  %v114 = vperm.slane %v112, 0
  %v115 = vunpack.c.l.bf16 %v81
  %v116 = vunpack.c.h.bf16 %v81
  %v117 = vunpack.c.l.bf16 %v82
  %v118 = vunpack.c.l.bf16 %v99
  %v119 = vunpack.c.l.bf16 %v104
  %v120 = vunpack.c.l.bf16 %v109
  %v121 = vunpack.c.l.bf16 %v114
  %v126 = vrot.slane %v119, 4
  %v127 = vrot.slane %v121, 4
  %v128 = vsel %vm57, %v118, %v126
  %v129 = vsel %vm57, %v120, %v127
  %130 = vrot.lane.b32.xlu0 %v128, 1
  %v131 = vpop.permute.xlu0 %130
  %132 = vrot.lane.b32.xlu0 %v129, 1
  %v133 = vpop.permute.xlu0 %132
  %v134 = vrot.slane %v131, 4
  %v135 = vrot.slane %v133, 4
  %vm136 = vcmask 7168
  %v137 = vsel %vm136, %v134, %v131
  %v138 = vsel %vm57, %v134, %v135
  %v139 = vsel %vm136, %v138, %v133
  %v143 = vmul.f32 %v115, %v137
  %v144 = vmul.f32 %v116, %v139
  %v145 = vmul.f32 %v117, %v135
  %149 = vst [vmem:[#allocation1] ss:$2 sm:$0xff] %v143
  %s150 = scalar_lea.vmem [#allocation1], 16
  %151 = vst [vmem:[%s150] ss:$2 sm:$0xff] %v144
  %s152 = scalar_lea.vmem [#allocation1], 32
  %153 = vst [vmem:[%s152] ss:$2 sm:$0xff] %v145
  %v154 = vld.sshfl [vmem:[#allocation1] sm:$0xff pattern:$0x75316420]
  %v155 = vld.sshfl [vmem:[#allocation1 + $0x8] sm:$0xff pattern:$0x75316420]
  %v156 = vld.sshfl [vmem:[#allocation1 + $0x10] sm:$0xff pattern:$0x75316420]
  %v157 = vld.sshfl [vmem:[#allocation1 + $0x18] sm:$0xff pattern:$0x75316420]
  %v158 = vld.sshfl [vmem:[#allocation1 + $0x20] sm:$0xff pattern:$0x75316420]
  %v164 = vpack.c.bf16 %v155, %v154
  %v165 = vpack.c.bf16 %v157, %v156
  %v166 = vpack.c.bf16 %v158, %v158
  %v170 = vrot.slane %v164, 6
  %v171 = vrot.slane %v165, 6
  %v172 = vrot.slane %v166, 6
  %173 = vrot.lane.b32.xlu0 %v170, 127
  %v174 = vpop.permute.xlu0 %173
  %175 = vrot.lane.b32.xlu0 %v171, 127
  %v176 = vpop.permute.xlu0 %175
  %177 = vrot.lane.b32.xlu0 %v172, 127
  %v178 = vpop.permute.xlu0 %177
  %v179 = vrot.slane %v174, 4
  %v180 = vrot.slane %v176, 4
  %v181 = vrot.slane %v178, 4
  %vm182 = vcmask 1043456
  %v183 = vsel %vm182, %v179, %v180
  %vm184 = vcmask 1039360
  %v185 = vsel %vm184, %v174, %v183
  %v186 = vsel %vm182, %v180, %v181
  %v187 = vsel %vm184, %v176, %v186
  %190 = vst [vmem:[#allocation2] sm:$0xcc] %v185
  %191 = vst [vmem:[#allocation2 + $0x8] sm:$0xcc] %v187
  %v192 = vld [vmem:[%s2] sm:$0xff]
  %v193 = vld [vmem:[%s2 + $0x8] sm:$0x3]
  %v194 = vld [vmem:[%s1] sm:$0x22]
  %v195 = vld [vmem:[%s1 + $0x8] sm:$0x22]
  %v198 = vunpack.c.l.b16 %v194
  %v199 = vunpack.c.h.b16 %v194
  %v200 = vunpack.c.l.b16 %v195
  %v201 = vunpack.c.h.b16 %v195
  %v202 = vpack.c.b16 %v198, %v198
  %v203 = vpack.c.b16 %v199, %v199
  %v204 = vpack.c.b16 %v200, %v200
  %v205 = vpack.c.b16 %v201, %v201
  %v207 = vpack.i.b16 %v202, %v202
  %v209 = vperm.slane %v207, 1
  %v211 = vpack.i.b16 %v203, %v203
  %v213 = vperm.slane %v211, 1
  %v215 = vpack.i.b16 %v204, %v204
  %v217 = vperm.slane %v215, 1
  %v219 = vpack.i.b16 %v205, %v205
  %v221 = vperm.slane %v219, 1
  %v222 = vunpack.c.l.bf16 %v192
  %v223 = vunpack.c.h.bf16 %v192
  %v224 = vunpack.c.l.bf16 %v193
  %v225 = vunpack.c.l.bf16 %v209
  %v226 = vunpack.c.l.bf16 %v213
  %v227 = vunpack.c.l.bf16 %v217
  %v228 = vunpack.c.l.bf16 %v221
  %v233 = vrot.slane %v226, 4
  %v234 = vrot.slane %v228, 4
  %v235 = vsel %vm57, %v225, %v233
  %v236 = vsel %vm57, %v227, %v234
  %237 = vrot.lane.b32.xlu0 %v235, 2
  %v238 = vpop.permute.xlu0 %237
  %239 = vrot.lane.b32.xlu0 %v236, 2
  %v240 = vpop.permute.xlu0 %239
  %v241 = vrot.slane %v238, 4
  %v242 = vrot.slane %v240, 4
  %vm243 = vcmask 15360
  %v244 = vsel %vm243, %v241, %v238
  %v245 = vsel %vm57, %v241, %v242
  %v246 = vsel %vm243, %v245, %v240
  %v250 = vmul.f32 %v222, %v244
  %v251 = vmul.f32 %v223, %v246
  %v252 = vmul.f32 %v224, %v242
  %256 = vst [vmem:[#allocation1] ss:$2 sm:$0xff] %v250
  %s257 = scalar_lea.vmem [#allocation1], 16
  %258 = vst [vmem:[%s257] ss:$2 sm:$0xff] %v251
  %s259 = scalar_lea.vmem [#allocation1], 32
  %260 = vst [vmem:[%s259] ss:$2 sm:$0xff] %v252
  %v261 = vld.sshfl [vmem:[#allocation1] sm:$0xff pattern:$0x75316420]
  %v262 = vld.sshfl [vmem:[#allocation1 + $0x8] sm:$0xff pattern:$0x75316420]
  %v263 = vld.sshfl [vmem:[#allocation1 + $0x10] sm:$0xff pattern:$0x75316420]
  %v264 = vld.sshfl [vmem:[#allocation1 + $0x18] sm:$0xff pattern:$0x75316420]
  %v265 = vld.sshfl [vmem:[#allocation1 + $0x20] sm:$0xff pattern:$0x75316420]
  %v271 = vpack.c.bf16 %v262, %v261
  %v272 = vpack.c.bf16 %v264, %v263
  %v273 = vpack.c.bf16 %v265, %v265
  %277 = vrot.lane.b32.xlu0 %v271, 126
  %v278 = vpop.permute.xlu0 %277
  %279 = vrot.lane.b32.xlu0 %v272, 126
  %v280 = vpop.permute.xlu0 %279
  %281 = vrot.lane.b32.xlu0 %v273, 126
  %v282 = vpop.permute.xlu0 %281
  %v283 = vrot.slane %v278, 4
  %v284 = vrot.slane %v280, 4
  %v285 = vrot.slane %v282, 4
  %v286 = vsel %vm182, %v283, %v284
  %vm287 = vcmask 1031168
  %v288 = vsel %vm287, %v278, %v286
  %v289 = vsel %vm182, %v284, %v285
  %v290 = vsel %vm287, %v280, %v289
  %293 = vst [vmem:[#allocation2 + $0x10] sm:$0x33] %v288
  %294 = vst [vmem:[#allocation2 + $0x18] sm:$0x33] %v290
  %v295 = vld [vmem:[%s2] sm:$0xff]
  %v296 = vld [vmem:[%s2 + $0x8] sm:$0x3]
  %v297 = vld [vmem:[%s1] sm:$0x22]
  %v298 = vld [vmem:[%s1 + $0x8] sm:$0x22]
  %v301 = vunpack.c.l.b16 %v297
  %v302 = vunpack.c.h.b16 %v297
  %v303 = vunpack.c.l.b16 %v298
  %v304 = vunpack.c.h.b16 %v298
  %v305 = vpack.c.b16 %v301, %v301
  %v306 = vpack.c.b16 %v302, %v302
  %v307 = vpack.c.b16 %v303, %v303
  %v308 = vpack.c.b16 %v304, %v304
  %v310 = vshrl.u32 %v305, 16
  %v311 = vpack.i.b16 %v310, %v310
  %v313 = vperm.slane %v311, 1
  %v315 = vshrl.u32 %v306, 16
  %v316 = vpack.i.b16 %v315, %v315
  %v318 = vperm.slane %v316, 1
  %v320 = vshrl.u32 %v307, 16
  %v321 = vpack.i.b16 %v320, %v320
  %v323 = vperm.slane %v321, 1
  %v325 = vshrl.u32 %v308, 16
  %v326 = vpack.i.b16 %v325, %v325
  %v328 = vperm.slane %v326, 1
  %v329 = vunpack.c.l.bf16 %v295
  %v330 = vunpack.c.h.bf16 %v295
  %v331 = vunpack.c.l.bf16 %v296
  %v332 = vunpack.c.l.bf16 %v313
  %v333 = vunpack.c.l.bf16 %v318
  %v334 = vunpack.c.l.bf16 %v323
  %v335 = vunpack.c.l.bf16 %v328
  %v340 = vrot.slane %v333, 4
  %v341 = vrot.slane %v335, 4
  %v342 = vsel %vm57, %v332, %v340
  %v343 = vsel %vm57, %v334, %v341
  %344 = vrot.lane.b32.xlu0 %v342, 16
  %v345 = vpop.permute.xlu0 %344
  %346 = vrot.lane.b32.xlu0 %v343, 16
  %v347 = vpop.permute.xlu0 %346
  %v348 = vrot.slane %v345, 4
  %v349 = vrot.slane %v347, 4
  %vm350 = vcmask 130048
  %v351 = vsel %vm350, %v348, %v345
  %v352 = vsel %vm57, %v348, %v349
  %v353 = vsel %vm350, %v352, %v347
  %v357 = vmul.f32 %v329, %v351
  %v358 = vmul.f32 %v330, %v353
  %v359 = vmul.f32 %v331, %v349
  %363 = vst [vmem:[#allocation1] ss:$2 sm:$0xff] %v357
  %s364 = scalar_lea.vmem [#allocation1], 16
  %365 = vst [vmem:[%s364] ss:$2 sm:$0xff] %v358
  %s366 = scalar_lea.vmem [#allocation1], 32
  %367 = vst [vmem:[%s366] ss:$2 sm:$0xff] %v359
  %v368 = vld.sshfl [vmem:[#allocation1] sm:$0xff pattern:$0x75316420]
  %v369 = vld.sshfl [vmem:[#allocation1 + $0x8] sm:$0xff pattern:$0x75316420]
  %v370 = vld.sshfl [vmem:[#allocation1 + $0x10] sm:$0xff pattern:$0x75316420]
  %v371 = vld.sshfl [vmem:[#allocation1 + $0x18] sm:$0xff pattern:$0x75316420]
  %v372 = vld.sshfl [vmem:[#allocation1 + $0x20] sm:$0xff pattern:$0x75316420]
  %v378 = vpack.c.bf16 %v369, %v368
  %v379 = vpack.c.bf16 %v371, %v370
  %v380 = vpack.c.bf16 %v372, %v372
  %v384 = vrot.slane %v378, 6
  %v385 = vrot.slane %v379, 6
  %v386 = vrot.slane %v380, 6
  %387 = vrot.lane.b32.xlu0 %v384, 112
  %v388 = vpop.permute.xlu0 %387
  %389 = vrot.lane.b32.xlu0 %v385, 112
  %v390 = vpop.permute.xlu0 %389
  %391 = vrot.lane.b32.xlu0 %v386, 112
  %v392 = vpop.permute.xlu0 %391
  %v393 = vrot.slane %v388, 4
  %v394 = vrot.slane %v390, 4
  %v395 = vrot.slane %v392, 4
  %v396 = vsel %vm182, %v393, %v394
  %vm397 = vcmask 916480
  %v398 = vsel %vm397, %v388, %v396
  %v399 = vsel %vm182, %v394, %v395
  %v400 = vsel %vm397, %v390, %v399
  %403 = vst [vmem:[#allocation2 + $0x10] sm:$0xcc] %v398
  %404 = vst [vmem:[#allocation2 + $0x18] sm:$0xcc] %v400
  %v405 = vld [vmem:[%s2] sm:$0xff]
  %v406 = vld [vmem:[%s2 + $0x8] sm:$0x3]
  %v407 = vld [vmem:[%s1] sm:$0x44]
  %v408 = vld [vmem:[%s1 + $0x8] sm:$0x44]
  %v411 = vunpack.c.l.b16 %v407
  %v412 = vunpack.c.h.b16 %v407
  %v413 = vunpack.c.l.b16 %v408
  %v414 = vunpack.c.h.b16 %v408
  %v415 = vpack.c.b16 %v411, %v411
  %v416 = vpack.c.b16 %v412, %v412
  %v417 = vpack.c.b16 %v413, %v413
  %v418 = vpack.c.b16 %v414, %v414
  %v420 = vpack.i.b16 %v415, %v415
  %v422 = vperm.slane %v420, 2
  %v424 = vpack.i.b16 %v416, %v416
  %v426 = vperm.slane %v424, 2
  %v428 = vpack.i.b16 %v417, %v417
  %v430 = vperm.slane %v428, 2
  %v432 = vpack.i.b16 %v418, %v418
  %v434 = vperm.slane %v432, 2
  %v435 = vunpack.c.l.bf16 %v405
  %v436 = vunpack.c.h.bf16 %v405
  %v437 = vunpack.c.l.bf16 %v406
  %v438 = vunpack.c.l.bf16 %v422
  %v439 = vunpack.c.l.bf16 %v426
  %v440 = vunpack.c.l.bf16 %v430
  %v441 = vunpack.c.l.bf16 %v434
  %v446 = vrot.slane %v439, 4
  %v447 = vrot.slane %v441, 4
  %v448 = vsel %vm57, %v438, %v446
  %v449 = vsel %vm57, %v440, %v447
  %450 = vrot.lane.b32.xlu0 %v448, 17
  %v451 = vpop.permute.xlu0 %450
  %452 = vrot.lane.b32.xlu0 %v449, 17
  %v453 = vpop.permute.xlu0 %452
  %v454 = vrot.slane %v451, 4
  %v455 = vrot.slane %v453, 4
  %vm456 = vcmask 138240
  %v457 = vsel %vm456, %v454, %v451
  %v458 = vsel %vm57, %v454, %v455
  %v459 = vsel %vm456, %v458, %v453
  %v463 = vmul.f32 %v435, %v457
  %v464 = vmul.f32 %v436, %v459
  %v465 = vmul.f32 %v437, %v455
  %469 = vst [vmem:[#allocation1] ss:$2 sm:$0xff] %v463
  %s470 = scalar_lea.vmem [#allocation1], 16
  %471 = vst [vmem:[%s470] ss:$2 sm:$0xff] %v464
  %s472 = scalar_lea.vmem [#allocation1], 32
  %473 = vst [vmem:[%s472] ss:$2 sm:$0xff] %v465
  %v474 = vld.sshfl [vmem:[#allocation1] sm:$0xff pattern:$0x75316420]
  %v475 = vld.sshfl [vmem:[#allocation1 + $0x8] sm:$0xff pattern:$0x75316420]
  %v476 = vld.sshfl [vmem:[#allocation1 + $0x10] sm:$0xff pattern:$0x75316420]
  %v477 = vld.sshfl [vmem:[#allocation1 + $0x18] sm:$0xff pattern:$0x75316420]
  %v478 = vld.sshfl [vmem:[#allocation1 + $0x20] sm:$0xff pattern:$0x75316420]
  %v484 = vpack.c.bf16 %v475, %v474
  %v485 = vpack.c.bf16 %v477, %v476
  %v486 = vpack.c.bf16 %v478, %v478
  %490 = vrot.lane.b32.xlu0 %v484, 111
  %v491 = vpop.permute.xlu0 %490
  %492 = vrot.lane.b32.xlu0 %v485, 111
  %v493 = vpop.permute.xlu0 %492
  %494 = vrot.lane.b32.xlu0 %v486, 111
  %v495 = vpop.permute.xlu0 %494
  %v496 = vrot.slane %v491, 4
  %v497 = vrot.slane %v493, 4
  %v498 = vrot.slane %v495, 4
  %v499 = vsel %vm182, %v496, %v497
  %vm500 = vcmask 908288
  %v501 = vsel %vm500, %v491, %v499
  %v502 = vsel %vm182, %v497, %v498
  %v503 = vsel %vm500, %v493, %v502
  %506 = vst [vmem:[#allocation2 + $0x20] sm:$0x33] %v501
  %507 = vst [vmem:[#allocation2 + $0x28] sm:$0x33] %v503
  %v508 = vld [vmem:[%s2] sm:$0xff]
  %v509 = vld [vmem:[%s2 + $0x8] sm:$0x3]
  %v510 = vld [vmem:[%s1] sm:$0x44]
  %v511 = vld [vmem:[%s1 + $0x8] sm:$0x44]
  %v514 = vunpack.c.l.b16 %v510
  %v515 = vunpack.c.h.b16 %v510
  %v516 = vunpack.c.l.b16 %v511
  %v517 = vunpack.c.h.b16 %v511
  %v518 = vpack.c.b16 %v514, %v514
  %v519 = vpack.c.b16 %v515, %v515
  %v520 = vpack.c.b16 %v516, %v516
  %v521 = vpack.c.b16 %v517, %v517
  %v523 = vshrl.u32 %v518, 16
  %v524 = vpack.i.b16 %v523, %v523
  %v526 = vperm.slane %v524, 2
  %v528 = vshrl.u32 %v519, 16
  %v529 = vpack.i.b16 %v528, %v528
  %v531 = vperm.slane %v529, 2
  %v533 = vshrl.u32 %v520, 16
  %v534 = vpack.i.b16 %v533, %v533
  %v536 = vperm.slane %v534, 2
  %v538 = vshrl.u32 %v521, 16
  %v539 = vpack.i.b16 %v538, %v538
  %v541 = vperm.slane %v539, 2
  %v542 = vunpack.c.l.bf16 %v508
  %v543 = vunpack.c.h.bf16 %v508
  %v544 = vunpack.c.l.bf16 %v509
  %v545 = vunpack.c.l.bf16 %v526
  %v546 = vunpack.c.l.bf16 %v531
  %v547 = vunpack.c.l.bf16 %v536
  %v548 = vunpack.c.l.bf16 %v541
  %v553 = vrot.slane %v546, 4
  %v554 = vrot.slane %v548, 4
  %v555 = vsel %vm57, %v545, %v553
  %v556 = vsel %vm57, %v547, %v554
  %557 = vrot.lane.b32.xlu0 %v555, 18
  %v558 = vpop.permute.xlu0 %557
  %559 = vrot.lane.b32.xlu0 %v556, 18
  %v560 = vpop.permute.xlu0 %559
  %v561 = vrot.slane %v558, 4
  %v562 = vrot.slane %v560, 4
  %vm563 = vcmask 146432
  %v564 = vsel %vm563, %v561, %v558
  %v565 = vsel %vm57, %v561, %v562
  %v566 = vsel %vm563, %v565, %v560
  %v570 = vmul.f32 %v542, %v564
  %v571 = vmul.f32 %v543, %v566
  %v572 = vmul.f32 %v544, %v562
  %576 = vst [vmem:[#allocation1] ss:$2 sm:$0xff] %v570
  %s577 = scalar_lea.vmem [#allocation1], 16
  %578 = vst [vmem:[%s577] ss:$2 sm:$0xff] %v571
  %s579 = scalar_lea.vmem [#allocation1], 32
  %580 = vst [vmem:[%s579] ss:$2 sm:$0xff] %v572
  %v581 = vld.sshfl [vmem:[#allocation1] sm:$0xff pattern:$0x75316420]
  %v582 = vld.sshfl [vmem:[#allocation1 + $0x8] sm:$0xff pattern:$0x75316420]
  %v583 = vld.sshfl [vmem:[#allocation1 + $0x10] sm:$0xff pattern:$0x75316420]
  %v584 = vld.sshfl [vmem:[#allocation1 + $0x18] sm:$0xff pattern:$0x75316420]
  %v585 = vld.sshfl [vmem:[#allocation1 + $0x20] sm:$0xff pattern:$0x75316420]
  %v591 = vpack.c.bf16 %v582, %v581
  %v592 = vpack.c.bf16 %v584, %v583
  %v593 = vpack.c.bf16 %v585, %v585
  %v597 = vrot.slane %v591, 6
  %v598 = vrot.slane %v592, 6
  %v599 = vrot.slane %v593, 6
  %600 = vrot.lane.b32.xlu0 %v597, 110
  %v601 = vpop.permute.xlu0 %600
  %602 = vrot.lane.b32.xlu0 %v598, 110
  %v603 = vpop.permute.xlu0 %602
  %604 = vrot.lane.b32.xlu0 %v599, 110
  %v605 = vpop.permute.xlu0 %604
  %v606 = vrot.slane %v601, 4
  %v607 = vrot.slane %v603, 4
  %v608 = vrot.slane %v605, 4
  %v609 = vsel %vm182, %v606, %v607
  %vm610 = vcmask 900096
  %v611 = vsel %vm610, %v601, %v609
  %v612 = vsel %vm182, %v607, %v608
  %v613 = vsel %vm610, %v603, %v612
  %616 = vst [vmem:[#allocation2 + $0x20] sm:$0xcc] %v611
  %617 = vst [vmem:[#allocation2 + $0x28] sm:$0xcc] %v613
  %v618 = vld [vmem:[%s2] sm:$0xff]
  %v619 = vld [vmem:[%s2 + $0x8] sm:$0x3]
  %v620 = vld [vmem:[%s1] sm:$0x88]
  %v621 = vld [vmem:[%s1 + $0x8] sm:$0x88]
  %v624 = vunpack.c.l.b16 %v620
  %v625 = vunpack.c.h.b16 %v620
  %v626 = vunpack.c.l.b16 %v621
  %v627 = vunpack.c.h.b16 %v621
  %v628 = vpack.c.b16 %v624, %v624
  %v629 = vpack.c.b16 %v625, %v625
  %v630 = vpack.c.b16 %v626, %v626
  %v631 = vpack.c.b16 %v627, %v627
  %v633 = vpack.i.b16 %v628, %v628
  %v635 = vperm.slane %v633, 3
  %v637 = vpack.i.b16 %v629, %v629
  %v639 = vperm.slane %v637, 3
  %v641 = vpack.i.b16 %v630, %v630
  %v643 = vperm.slane %v641, 3
  %v645 = vpack.i.b16 %v631, %v631
  %v647 = vperm.slane %v645, 3
  %v648 = vunpack.c.l.bf16 %v618
  %v649 = vunpack.c.h.bf16 %v618
  %v650 = vunpack.c.l.bf16 %v619
  %v651 = vunpack.c.l.bf16 %v635
  %v652 = vunpack.c.l.bf16 %v639
  %v653 = vunpack.c.l.bf16 %v643
  %v654 = vunpack.c.l.bf16 %v647
  %v659 = vrot.slane %v652, 4
  %v660 = vrot.slane %v654, 4
  %v661 = vsel %vm57, %v651, %v659
  %v662 = vsel %vm57, %v653, %v660
  %663 = vrot.lane.b32.xlu0 %v661, 32
  %v664 = vpop.permute.xlu0 %663
  %665 = vrot.lane.b32.xlu0 %v662, 32
  %v666 = vpop.permute.xlu0 %665
  %v667 = vrot.slane %v664, 4
  %v668 = vrot.slane %v666, 4
  %vm669 = vcmask 261120
  %v670 = vsel %vm669, %v667, %v664
  %v671 = vsel %vm57, %v667, %v668
  %v672 = vsel %vm669, %v671, %v666
  %v676 = vmul.f32 %v648, %v670
  %v677 = vmul.f32 %v649, %v672
  %v678 = vmul.f32 %v650, %v668
  %682 = vst [vmem:[#allocation1] ss:$2 sm:$0xff] %v676
  %s683 = scalar_lea.vmem [#allocation1], 16
  %684 = vst [vmem:[%s683] ss:$2 sm:$0xff] %v677
  %s685 = scalar_lea.vmem [#allocation1], 32
  %686 = vst [vmem:[%s685] ss:$2 sm:$0xff] %v678
  %v687 = vld.sshfl [vmem:[#allocation1] sm:$0xff pattern:$0x75316420]
  %v688 = vld.sshfl [vmem:[#allocation1 + $0x8] sm:$0xff pattern:$0x75316420]
  %v689 = vld.sshfl [vmem:[#allocation1 + $0x10] sm:$0xff pattern:$0x75316420]
  %v690 = vld.sshfl [vmem:[#allocation1 + $0x18] sm:$0xff pattern:$0x75316420]
  %v691 = vld.sshfl [vmem:[#allocation1 + $0x20] sm:$0xff pattern:$0x75316420]
  %v697 = vpack.c.bf16 %v688, %v687
  %v698 = vpack.c.bf16 %v690, %v689
  %v699 = vpack.c.bf16 %v691, %v691
  %703 = vrot.lane.b32.xlu0 %v697, 96
  %v704 = vpop.permute.xlu0 %703
  %705 = vrot.lane.b32.xlu0 %v698, 96
  %v706 = vpop.permute.xlu0 %705
  %707 = vrot.lane.b32.xlu0 %v699, 96
  %v708 = vpop.permute.xlu0 %707
  %v709 = vrot.slane %v704, 4
  %v710 = vrot.slane %v706, 4
  %v711 = vrot.slane %v708, 4
  %v712 = vsel %vm182, %v709, %v710
  %vm713 = vcmask 785408
  %v714 = vsel %vm713, %v704, %v712
  %v715 = vsel %vm182, %v710, %v711
  %v716 = vsel %vm713, %v706, %v715
  %719 = vst [vmem:[#allocation2 + $0x30] sm:$0x33] %v714
  %720 = vst [vmem:[#allocation2 + $0x38] sm:$0x33] %v716
  %v721 = vld [vmem:[%s2] sm:$0xff]
  %v722 = vld [vmem:[%s2 + $0x8] sm:$0x3]
  %v723 = vld [vmem:[%s1] sm:$0x88]
  %v724 = vld [vmem:[%s1 + $0x8] sm:$0x88]
  %v727 = vunpack.c.l.b16 %v723
  %v728 = vunpack.c.h.b16 %v723
  %v729 = vunpack.c.l.b16 %v724
  %v730 = vunpack.c.h.b16 %v724
  %v731 = vpack.c.b16 %v727, %v727
  %v732 = vpack.c.b16 %v728, %v728
  %v733 = vpack.c.b16 %v729, %v729
  %v734 = vpack.c.b16 %v730, %v730
  %v736 = vshrl.u32 %v731, 16
  %v737 = vpack.i.b16 %v736, %v736
  %v739 = vperm.slane %v737, 3
  %v741 = vshrl.u32 %v732, 16
  %v742 = vpack.i.b16 %v741, %v741
  %v744 = vperm.slane %v742, 3
  %v746 = vshrl.u32 %v733, 16
  %v747 = vpack.i.b16 %v746, %v746
  %v749 = vperm.slane %v747, 3
  %v751 = vshrl.u32 %v734, 16
  %v752 = vpack.i.b16 %v751, %v751
  %v754 = vperm.slane %v752, 3
  %v755 = vunpack.c.l.bf16 %v721
  %v756 = vunpack.c.h.bf16 %v721
  %v757 = vunpack.c.l.bf16 %v722
  %v758 = vunpack.c.l.bf16 %v739
  %v759 = vunpack.c.l.bf16 %v744
  %v760 = vunpack.c.l.bf16 %v749
  %v761 = vunpack.c.l.bf16 %v754
  %v766 = vrot.slane %v759, 4
  %v767 = vrot.slane %v761, 4
  %v768 = vsel %vm57, %v758, %v766
  %v769 = vsel %vm57, %v760, %v767
  %770 = vrot.lane.b32.xlu0 %v768, 33
  %v771 = vpop.permute.xlu0 %770
  %772 = vrot.lane.b32.xlu0 %v769, 33
  %v773 = vpop.permute.xlu0 %772
  %v774 = vrot.slane %v771, 4
  %v775 = vrot.slane %v773, 4
  %vm776 = vcmask 269312
  %v777 = vsel %vm776, %v774, %v771
  %v778 = vsel %vm57, %v774, %v775
  %v779 = vsel %vm776, %v778, %v773
  %v783 = vmul.f32 %v755, %v777
  %v784 = vmul.f32 %v756, %v779
  %v785 = vmul.f32 %v757, %v775
  %789 = vst [vmem:[#allocation1] ss:$2 sm:$0xff] %v783
  %s790 = scalar_lea.vmem [#allocation1], 16
  %791 = vst [vmem:[%s790] ss:$2 sm:$0xff] %v784
  %s792 = scalar_lea.vmem [#allocation1], 32
  %793 = vst [vmem:[%s792] ss:$2 sm:$0xff] %v785
  %v794 = vld.sshfl [vmem:[#allocation1] sm:$0xff pattern:$0x75316420]
  %v795 = vld.sshfl [vmem:[#allocation1 + $0x8] sm:$0xff pattern:$0x75316420]
  %v796 = vld.sshfl [vmem:[#allocation1 + $0x10] sm:$0xff pattern:$0x75316420]
  %v797 = vld.sshfl [vmem:[#allocation1 + $0x18] sm:$0xff pattern:$0x75316420]
  %v798 = vld.sshfl [vmem:[#allocation1 + $0x20] sm:$0xff pattern:$0x75316420]
  %v804 = vpack.c.bf16 %v795, %v794
  %v805 = vpack.c.bf16 %v797, %v796
  %v806 = vpack.c.bf16 %v798, %v798
  %v810 = vrot.slane %v804, 6
  %v811 = vrot.slane %v805, 6
  %v812 = vrot.slane %v806, 6
  %813 = vrot.lane.b32.xlu0 %v810, 95
  %v814 = vpop.permute.xlu0 %813
  %815 = vrot.lane.b32.xlu0 %v811, 95
  %v816 = vpop.permute.xlu0 %815
  %817 = vrot.lane.b32.xlu0 %v812, 95
  %v818 = vpop.permute.xlu0 %817
  %v819 = vrot.slane %v814, 4
  %v820 = vrot.slane %v816, 4
  %v821 = vrot.slane %v818, 4
  %v822 = vsel %vm182, %v819, %v820
  %vm823 = vcmask 777216
  %v824 = vsel %vm823, %v814, %v822
  %v825 = vsel %vm182, %v820, %v821
  %v826 = vsel %vm823, %v816, %v825
  %829 = vst [vmem:[#allocation2 + $0x30] sm:$0xcc] %v824
  %830 = vst [vmem:[#allocation2 + $0x38] sm:$0xcc] %v826
  %v831 = vld [vmem:[%s2] sm:$0xff]
  %v832 = vld [vmem:[%s2 + $0x8] sm:$0x3]
  %v833 = vld [vmem:[%s1 + $0x10] sm:$0x11]
  %v834 = vld [vmem:[%s1 + $0x18] sm:$0x11]
  %v837 = vunpack.c.l.b16 %v833
  %v838 = vunpack.c.h.b16 %v833
  %v839 = vunpack.c.l.b16 %v834
  %v840 = vunpack.c.h.b16 %v834
  %v841 = vpack.c.b16 %v837, %v837
  %v842 = vpack.c.b16 %v838, %v838
  %v843 = vpack.c.b16 %v839, %v839
  %v844 = vpack.c.b16 %v840, %v840
  %v846 = vpack.i.b16 %v841, %v841
  %v848 = vperm.slane %v846, 0
  %v850 = vpack.i.b16 %v842, %v842
  %v852 = vperm.slane %v850, 0
  %v854 = vpack.i.b16 %v843, %v843
  %v856 = vperm.slane %v854, 0
  %v858 = vpack.i.b16 %v844, %v844
  %v860 = vperm.slane %v858, 0
  %v861 = vunpack.c.l.bf16 %v831
  %v862 = vunpack.c.h.bf16 %v831
  %v863 = vunpack.c.l.bf16 %v832
  %v864 = vunpack.c.l.bf16 %v848
  %v865 = vunpack.c.l.bf16 %v852
  %v866 = vunpack.c.l.bf16 %v856
  %v867 = vunpack.c.l.bf16 %v860
  %v872 = vrot.slane %v865, 4
  %v873 = vrot.slane %v867, 4
  %v874 = vsel %vm57, %v864, %v872
  %v875 = vsel %vm57, %v866, %v873
  %876 = vrot.lane.b32.xlu0 %v874, 34
  %v877 = vpop.permute.xlu0 %876
  %878 = vrot.lane.b32.xlu0 %v875, 34
  %v879 = vpop.permute.xlu0 %878
  %v880 = vrot.slane %v877, 4
  %v881 = vrot.slane %v879, 4
  %vm882 = vcmask 277504
  %v883 = vsel %vm882, %v880, %v877
  %v884 = vsel %vm57, %v880, %v881
  %v885 = vsel %vm882, %v884, %v879
  %v889 = vmul.f32 %v861, %v883
  %v890 = vmul.f32 %v862, %v885
  %v891 = vmul.f32 %v863, %v881
  %895 = vst [vmem:[#allocation1] ss:$2 sm:$0xff] %v889
  %s896 = scalar_lea.vmem [#allocation1], 16
  %897 = vst [vmem:[%s896] ss:$2 sm:$0xff] %v890
  %s898 = scalar_lea.vmem [#allocation1], 32
  %899 = vst [vmem:[%s898] ss:$2 sm:$0xff] %v891
  %v900 = vld.sshfl [vmem:[#allocation1] sm:$0xff pattern:$0x75316420]
  %v901 = vld.sshfl [vmem:[#allocation1 + $0x8] sm:$0xff pattern:$0x75316420]
  %v902 = vld.sshfl [vmem:[#allocation1 + $0x10] sm:$0xff pattern:$0x75316420]
  %v903 = vld.sshfl [vmem:[#allocation1 + $0x18] sm:$0xff pattern:$0x75316420]
  %v904 = vld.sshfl [vmem:[#allocation1 + $0x20] sm:$0xff pattern:$0x75316420]
  %v910 = vpack.c.bf16 %v901, %v900
  %v911 = vpack.c.bf16 %v903, %v902
  %v912 = vpack.c.bf16 %v904, %v904
  %916 = vrot.lane.b32.xlu0 %v910, 94
  %v917 = vpop.permute.xlu0 %916
  %918 = vrot.lane.b32.xlu0 %v911, 94
  %v919 = vpop.permute.xlu0 %918
  %920 = vrot.lane.b32.xlu0 %v912, 94
  %v921 = vpop.permute.xlu0 %920
  %v922 = vrot.slane %v917, 4
  %v923 = vrot.slane %v919, 4
  %v924 = vrot.slane %v921, 4
  %v925 = vsel %vm182, %v922, %v923
  %vm926 = vcmask 769024
  %v927 = vsel %vm926, %v917, %v925
  %v928 = vsel %vm182, %v923, %v924
  %v929 = vsel %vm926, %v919, %v928
  %932 = vst [vmem:[#allocation2 + $0x40] sm:$0x33] %v927
  %933 = vst [vmem:[#allocation2 + $0x48] sm:$0x33] %v929
  %vm934 = vcmask 1042434
  %vm935 = vsmask.f32 2304
  %vm936 = vmand %vm934, %vm935
  %vm937 = vcmask 1046534
  %vm938 = vsmask.f32 6400
  %vm939 = vmand %vm937, %vm938
  %vm940 = vmor %vm939, %vm936
  %v941 = vld [vmem:[#allocation2 + $0x40] sm:$0x44]
  %v942 = vsel %vm940, 1065369472, %v941
  %943 = vst [vmem:[#allocation2 + $0x40] sm:$0x44] %v942
  %v944 = vld [vmem:[#allocation2 + $0x48] sm:$0x44]
  %v945 = vsel %vm940, 1065369472, %v944
  %946 = vst [vmem:[#allocation2 + $0x48] sm:$0x44] %v945
  %v947 = vld [vmem:[%s0] sm:$0xf]
  %v948 = vld [vmem:[#allocation2] sm:$0xff]
  %v949 = vld [vmem:[#allocation2 + $0x8] sm:$0xff]
  %v950 = vld [vmem:[#allocation2 + $0x10] sm:$0xff]
  %v951 = vld [vmem:[#allocation2 + $0x18] sm:$0xff]
  %v952 = vld [vmem:[#allocation2 + $0x20] sm:$0xff]
  %v953 = vld [vmem:[#allocation2 + $0x28] sm:$0xff]
  %v954 = vld [vmem:[#allocation2 + $0x30] sm:$0xff]
  %v955 = vld [vmem:[#allocation2 + $0x38] sm:$0xff]
  %v956 = vld [vmem:[#allocation2 + $0x40] sm:$0x77]
  %v957 = vld [vmem:[#allocation2 + $0x48] sm:$0x77]
  %v968 = vunpack.c.l.b16 %v948
  %v969 = vunpack.c.h.b16 %v948
  %v970 = vunpack.c.l.b16 %v949
  %v971 = vunpack.c.h.b16 %v949
  %v972 = vunpack.c.l.b16 %v950
  %v973 = vunpack.c.h.b16 %v950
  %v974 = vunpack.c.l.b16 %v951
  %v975 = vunpack.c.h.b16 %v951
  %v976 = vunpack.c.l.b16 %v952
  %v977 = vunpack.c.h.b16 %v952
  %v978 = vunpack.c.l.b16 %v953
  %v979 = vunpack.c.h.b16 %v953
  %v980 = vunpack.c.l.b16 %v954
  %v981 = vunpack.c.h.b16 %v954
  %v982 = vunpack.c.l.b16 %v955
  %v983 = vunpack.c.h.b16 %v955
  %v984 = vunpack.c.l.b16 %v956
  %v985 = vunpack.c.h.b16 %v956
  %v986 = vunpack.c.l.b16 %v957
  %v987 = vunpack.c.h.b16 %v957
  %v988 = vpack.c.b16 %v972, %v968
  %v989 = vpack.c.b16 %v973, %v969
  %v990 = vpack.c.b16 %v974, %v970
  %v991 = vpack.c.b16 %v975, %v971
  %v992 = vpack.c.b16 %v980, %v976
  %v993 = vpack.c.b16 %v981, %v977
  %v994 = vpack.c.b16 %v982, %v978
  %v995 = vpack.c.b16 %v983, %v979
  %v996 = vpack.c.b16 %v984, %v984
  %v997 = vpack.c.b16 %v985, %v985
  %v998 = vpack.c.b16 %v986, %v986
  %v999 = vpack.c.b16 %v987, %v987
  %vm1008 = vcmask 302080
  %v1010 = vsel %vm1008, %v947, 0
  %vm1012 = vcmask 1041408
  %vm1013 = vcmask 1042432
  %v1014 = vsel %vm1012, 4294967295, 65535
  %v1015 = vsel %vm1013, %v1014, 0
  %v1017 = vand.u32 %v996, %v1015
  %v1020 = vand.u32 %v997, %v1015
  %v1023 = vand.u32 %v998, %v1015
  %v1026 = vand.u32 %v999, %v1015
  %1028 = vmatpush.bf16.msra.mxu0 0
  %1029 = vmatpush.bf16.msra.mxu0 0
  %1030 = vmatpush.bf16.msra.mxu0 0
  %1031 = vmatpush.bf16.msra.mxu0 0
  %1032 = vmatpush.bf16.msra.mxu0 0
  %1033 = vmatpush.bf16.msra.mxu0 %v1017
  %1034 = vmatpush.bf16.msra.mxu0 %v992
  %1035 = vmatpush.bf16.msra.mxu0 %v988
  %1036 = vmatmul.bf16.gmra.mxu0 %v1010
  %v1037 = vpop.f32.mrf.mxu0
  %v1038 = vadd.f32 0.0, %v1037
  %v1039 = vpop.f32.mrf.mxu0
  %1040 = vdwg.mxu0
  %1041 = vmatpush.bf16.msra.mxu0 0
  %1042 = vmatpush.bf16.msra.mxu0 0
  %1043 = vmatpush.bf16.msra.mxu0 0
  %1044 = vmatpush.bf16.msra.mxu0 0
  %1045 = vmatpush.bf16.msra.mxu0 0
  %1046 = vmatpush.bf16.msra.mxu0 %v1020
  %1047 = vmatpush.bf16.msra.mxu0 %v993
  %1048 = vmatpush.bf16.msra.mxu0 %v989
  %1049 = vmatmul.bf16.gmra.mxu0 %v1010
  %v1050 = vpop.f32.mrf.mxu0
  %v1051 = vadd.f32 0.0, %v1050
  %v1052 = vpop.f32.mrf.mxu0
  %1053 = vdwg.mxu0
  %1054 = vmatpush.bf16.msra.mxu0 0
  %1055 = vmatpush.bf16.msra.mxu0 0
  %1056 = vmatpush.bf16.msra.mxu0 0
  %1057 = vmatpush.bf16.msra.mxu0 0
  %1058 = vmatpush.bf16.msra.mxu0 0
  %1059 = vmatpush.bf16.msra.mxu0 %v1023
  %1060 = vmatpush.bf16.msra.mxu0 %v994
  %1061 = vmatpush.bf16.msra.mxu0 %v990
  %1062 = vmatmul.bf16.gmra.mxu0 %v1010
  %v1063 = vpop.f32.mrf.mxu0
  %v1064 = vadd.f32 0.0, %v1063
  %v1065 = vpop.f32.mrf.mxu0
  %1066 = vdwg.mxu0
  %1067 = vmatpush.bf16.msra.mxu0 0
  %1068 = vmatpush.bf16.msra.mxu0 0
  %1069 = vmatpush.bf16.msra.mxu0 0
  %1070 = vmatpush.bf16.msra.mxu0 0
  %1071 = vmatpush.bf16.msra.mxu0 0
  %1072 = vmatpush.bf16.msra.mxu0 %v1026
  %1073 = vmatpush.bf16.msra.mxu0 %v995
  %1074 = vmatpush.bf16.msra.mxu0 %v991
  %1075 = vmatmul.bf16.gmra.mxu0 %v1010
  %v1076 = vpop.f32.mrf.mxu0
  %v1077 = vadd.f32 0.0, %v1076
  %v1078 = vpop.f32.mrf.mxu0
  %1079 = vdwg.mxu0
  %v1080 = vmul.f32 %v1038, 0.1
  %v1081 = vmul.f32 %v1051, 0.1
  %v1082 = vmul.f32 %v1064, 0.1
  %v1083 = vmul.f32 %v1077, 0.1
  %v1084 = vmax.f32 %v1038, %v1080
  %v1085 = vmax.f32 %v1051, %v1081
  %v1086 = vmax.f32 %v1064, %v1082
  %v1087 = vmax.f32 %v1077, %v1083
  %v1088 = vpack.c.bf16 %v1085, %v1084
  %v1089 = vpack.c.bf16 %v1087, %v1086
  %1090 = vst [vmem:[%s3] sm:$0xff] %v1088
  %1091 = vst [vmem:[%s3 + $0x8] sm:$0xff] %v1089
  // Predicated region
  $region14: #{data_parallel_forward.1} parent=0 // pred_check
    _
  $region15: #{data_parallel_forward.1} parent=0 // pred_check_branch
    %1093 = sbr.rel (0) target = $region17
  $region16: #{data_parallel_forward.1} parent=0 // pred_region
    _
  $region17: #{data_parallel_forward.1} parent=0 // pred_fallthru
    _
  // Predicated region
  $region18: #{data_parallel_forward.1} parent=0 // pred_check
    _
  $region19: #{data_parallel_forward.1} parent=0 // pred_check_branch
    %1095 = sbr.rel (0) target = $region21
  $region20: #{data_parallel_forward.1} parent=0 // pred_region
    _
  $region21: #{data_parallel_forward.1} parent=0 // pred_fallthru
    _

</llo_original>
